<compile_context>
chip_gen: v7x
topology: tpu7x:2x2x1
jax: 0.10.0
libtpu: 0.0.40
codegen_flags: <defaults>
</compile_context>

<pallas_src>
import functools
import math

import jax
import jax.numpy as jnp
from jax import lax
from jax.experimental import pallas as pl
from jax.experimental.pallas import tpu as pltpu


def _round_up(x, m):
    return ((x + m - 1) // m) * m


# ----------------------- fused SSD head Pallas kernel -----------------------

def _ssd_head_kernel(feat_ref, w_ref, anch_ref, scores_ref, boxes_ref,
                     stack_ref, *, shifts, num_anchors, num_classes, cls_pad,
                     img_h, img_w, bbox_clip):
    """Per image: both 3x3 head convs as ONE stacked-K MXU matmul (bias folded
    in), per-anchor class softmax, torchvision box decode + clip.  Layout is
    lane-dense everywhere: channels / classes / coords on sublanes, padded-flat
    spatial positions on the 128-lane axis."""
    C = feat_ref.shape[1]
    n_lanes = scores_ref.shape[-1]
    k_pad = stack_ref.shape[0]
    tap_rows = len(shifts) * C

    # --- build the stacked-K im2col tile once in VMEM scratch ---------------
    feat = feat_ref[0]                                   # [C, flat_in] bf16
    for k, s in enumerate(shifts):                       # 9 static lane windows
        stack_ref[k * C:(k + 1) * C, :] = feat[:, s:s + n_lanes]
    # Constant-ones tail: row tap_rows multiplies the bias column of the packed
    # weights; the remaining pad rows hit all-zero weight columns.
    stack_ref[tap_rows:, :] = jnp.ones((k_pad - tap_rows, n_lanes),
                                       stack_ref.dtype)

    # --- ONE stacked-K matmul on the MXU, f32 accumulation, bias included ---
    acc = jnp.dot(w_ref[...], stack_ref[...],
                  preferred_element_type=jnp.float32)    # [NOUT_pad, n_lanes]

    # --- classification epilogue: softmax over classes, batched over anchors
    n_cls_rows = num_anchors * num_classes
    logits = acc[0:n_cls_rows].reshape(num_anchors, num_classes, n_lanes)
    m = jnp.max(logits, axis=1, keepdims=True)
    e = jnp.exp(logits - m)
    denom = jnp.sum(e, axis=1, keepdims=True)
    probs = e / denom                                    # exact (F.softmax)
    scores_ref[0] = probs.reshape(n_cls_rows, n_lanes)   # one dense store

    # --- box epilogue: box_coder.decode_single + clip, batched over anchors -
    d = acc[cls_pad:cls_pad + 4 * num_anchors].reshape(num_anchors, 4, n_lanes)
    an = anch_ref[...].reshape(num_anchors, 4, n_lanes)  # x1,y1,x2,y2
    widths = an[:, 2:3] - an[:, 0:1]
    heights = an[:, 3:4] - an[:, 1:2]
    ctr_x = an[:, 0:1] + 0.5 * widths
    ctr_y = an[:, 1:2] + 0.5 * heights
    dx = d[:, 0:1] * 0.1                                 # torchvision weights
    dy = d[:, 1:2] * 0.1                                 # (10, 10, 5, 5)
    dwh = jnp.minimum(d[:, 2:4] * 0.2, bbox_clip)
    pwh = jnp.exp(dwh) * jnp.concatenate([widths, heights], axis=1)  # one exp
    pw = pwh[:, 0:1]
    ph = pwh[:, 1:2]
    pcx = dx * widths + ctr_x
    pcy = dy * heights + ctr_y
    x1 = jnp.clip(pcx - 0.5 * pw, 0.0, img_w)
    y1 = jnp.clip(pcy - 0.5 * ph, 0.0, img_h)
    x2 = jnp.clip(pcx + 0.5 * pw, 0.0, img_w)
    y2 = jnp.clip(pcy + 0.5 * ph, 0.0, img_h)
    boxes = jnp.concatenate([x1, y1, x2, y2], axis=1)    # [A, 4, n_lanes]
    boxes_ref[0] = boxes.reshape(4 * num_anchors, n_lanes)


def ssd_head_fused(feat_flat, w_packed, anchors_flat, *, shifts, num_anchors,
                   num_classes, cls_pad, img_h, img_w):
    B, C, flat_in = feat_flat.shape
    nout_pad, k_pad = w_packed.shape
    n_lanes = anchors_flat.shape[-1]
    n_cls_rows = num_anchors * num_classes
    n_box_rows = 4 * num_anchors

    kern = functools.partial(
        _ssd_head_kernel, shifts=shifts, num_anchors=num_anchors,
        num_classes=num_classes, cls_pad=cls_pad, img_h=img_h, img_w=img_w,
        bbox_clip=math.log(1000.0 / 16.0))

    cost = pl.CostEstimate(
        flops=2 * B * nout_pad * k_pad * n_lanes,
        transcendentals=B * n_lanes * (n_cls_rows + 2 * num_anchors),
        bytes_accessed=(B * C * flat_in * 2 + nout_pad * k_pad * 2
                        + n_box_rows * n_lanes * 4
                        + B * (n_cls_rows + n_box_rows) * n_lanes * 4))

    # TODO(synk): on v7x with B==1, add a second "parallel" lane-tiled grid
    #             axis so both TensorCores have work; on v5e/v6e a whole-batch
    #             single grid step would shave the (tiny) per-step overhead.
    return pl.pallas_call(
        kern,
        out_shape=(jax.ShapeDtypeStruct((B, n_cls_rows, n_lanes), jnp.float32),
                   jax.ShapeDtypeStruct((B, n_box_rows, n_lanes), jnp.float32)),
        grid=(B,),
        in_specs=[
            pl.BlockSpec((1, C, flat_in), lambda b: (b, 0, 0)),     # features
            pl.BlockSpec((nout_pad, k_pad), lambda b: (0, 0)),      # weights+bias
            pl.BlockSpec((n_box_rows, n_lanes), lambda b: (0, 0)),  # anchors
        ],
        out_specs=(
            pl.BlockSpec((1, n_cls_rows, n_lanes), lambda b: (b, 0, 0)),
            pl.BlockSpec((1, n_box_rows, n_lanes), lambda b: (b, 0, 0)),
        ),
        scratch_shapes=[pltpu.VMEM((k_pad, n_lanes), jnp.bfloat16)],
        compiler_params=pltpu.CompilerParams(
            dimension_semantics=("parallel",)),
        cost_estimate=cost,
    )(feat_flat, w_packed, anchors_flat)


# -------------------------------- JAX glue ----------------------------------

def _pack_head_weights(w_cls, w_box, b_cls, b_box, *, cls_pad):
    """HWIO cls/box head weights + biases -> one lane-dense bf16 matrix
    [NOUT_pad, K_pad] whose columns are (tap-major, channel-minor) to match the
    in-kernel tap stack, with the bias in column 9*C and zeros after it."""
    kh, kw, cin, n_cls = w_cls.shape
    n_box = w_box.shape[-1]
    tap_rows = kh * kw * cin
    k_pad = _round_up(tap_rows + 1, 16)            # bf16 sublane packing of stack
    nout_pad = cls_pad + _round_up(n_box, 8)
    wc = w_cls.transpose(3, 0, 1, 2).reshape(n_cls, tap_rows)
    wb = w_box.transpose(3, 0, 1, 2).reshape(n_box, tap_rows)
    w = jnp.zeros((nout_pad, k_pad), jnp.float32)
    w = w.at[0:n_cls, 0:tap_rows].set(wc)
    w = w.at[0:n_cls, tap_rows].set(b_cls)
    w = w.at[cls_pad:cls_pad + n_box, 0:tap_rows].set(wb)
    w = w.at[cls_pad:cls_pad + n_box, tap_rows].set(b_box)
    return w.astype(jnp.bfloat16)


def _make_anchors_flat(Hf, Wf, WP, img_h, img_w, sizes, n_lanes):
    """Synthetic DefaultBoxGenerator-style anchors (xyxy, image coords) laid
    out coords-major on the padded-width flat-spatial lane grid."""
    # TODO(synk): synthetic square anchors (no aspect ratios / torchvision
    #             DefaultBoxGenerator scales).
    lane = jnp.arange(n_lanes, dtype=jnp.int32)
    cy = ((lane // WP).astype(jnp.float32) + 0.5) * (img_h / Hf)
    cx = ((lane % WP).astype(jnp.float32) + 0.5) * (img_w / Wf)
    rows = []
    for s in sizes:
        half = float(s) / 2.0
        rows += [cx - half, cy - half, cx + half, cy + half]
    return jnp.stack(rows, axis=0)                       # [4*A, n_lanes] f32


def _compact_lanes(x, Hf, Wf):
    """[B, R, n_lanes] in padded-width (Wf+2) flat layout -> [B, R, Hf*Wf]."""
    B, R, _ = x.shape
    WP = Wf + 2
    x = x[:, :, :Hf * WP].reshape(B, R, Hf, WP)
    return x[..., :Wf].reshape(B, R, Hf * Wf)


def _batched_nms(boxes, scores, labels, valid, iou_thresh):
    """Greedy class-aware NMS (torchvision batched_nms coordinate-offset trick)."""
    # TODO(synk): NMS is a sequential, data-dependent loop -> plain JAX, no
    #             clean Pallas mapping (IoU against all boxes is batched per step).
    max_coord = jnp.max(boxes) + 1.0
    b = boxes + labels.astype(jnp.float32)[:, None] * max_coord
    order = jnp.argsort(-jnp.where(valid, scores, -1.0))
    b_s = b[order]
    valid_s = valid[order]
    n = boxes.shape[0]
    areas = (b_s[:, 2] - b_s[:, 0]) * (b_s[:, 3] - b_s[:, 1])

    def body(i, state):
        keep, suppressed = state
        alive = jnp.logical_and(valid_s[i], jnp.logical_not(suppressed[i]))
        keep = keep.at[i].set(alive)
        x1 = jnp.maximum(b_s[i, 0], b_s[:, 0])
        y1 = jnp.maximum(b_s[i, 1], b_s[:, 1])
        x2 = jnp.minimum(b_s[i, 2], b_s[:, 2])
        y2 = jnp.minimum(b_s[i, 3], b_s[:, 3])
        inter = jnp.maximum(x2 - x1, 0.0) * jnp.maximum(y2 - y1, 0.0)
        iou = inter / (areas[i] + areas - inter + 1e-9)
        sup = jnp.logical_and(alive,
                              jnp.logical_and(iou > iou_thresh, jnp.arange(n) > i))
        return keep, jnp.logical_or(suppressed, sup)

    keep0 = jnp.zeros((n,), dtype=bool)
    sup0 = jnp.logical_not(valid_s)
    keep, _ = lax.fori_loop(0, n, body, (keep0, sup0))
    return order, keep


def _postprocess_image(scores, boxes, *, score_thresh, k_per_class, nms_thresh,
                       detections_per_img, topk_candidates):
    """Fixed-shape (masked) version of the per-image dynamic post-processing."""
    # TODO(synk): PyTorch uses dynamic-length boolean filtering; here invalid
    #             candidates are masked and may appear as padding ('valid' flag).
    A, C = scores.shape
    k = min(k_per_class, A)
    fg = scores[:, 1:]                                          # [A, C-1]
    masked = jnp.where(fg > score_thresh, fg, -jnp.inf)
    top_s, top_i = lax.top_k(masked.T, k)                       # [C-1, k]
    cand_scores = top_s.reshape(-1)
    cand_idx = top_i.reshape(-1)
    cand_labels = jnp.repeat(jnp.arange(1, C, dtype=jnp.int32), k)
    cand_boxes = boxes[cand_idx]                                # [(C-1)*k, 4]
    cand_all = scores[cand_idx]                                 # [(C-1)*k, C]
    valid = jnp.isfinite(cand_scores)

    order, keep = _batched_nms(cand_boxes, cand_scores, cand_labels, valid,
                               nms_thresh)
    n = keep.shape[0]
    sort_key = jnp.where(keep, jnp.arange(n), n + jnp.arange(n))
    sel = jnp.argsort(sort_key)[:detections_per_img]
    final_idx = order[sel]
    final_boxes = cand_boxes[final_idx]
    final_all = cand_all[final_idx]
    top_scores, top_cls = lax.top_k(final_all[:, 1:], topk_candidates)
    # labels are int32 (PyTorch int64; TPU default is 32-bit).
    return {"boxes": final_boxes,
            "scores": top_scores,
            "labels": (top_cls + 1).astype(jnp.int32),
            "valid": keep[sel]}


def ssd_forward(images, params, *, num_anchors, num_classes, anchor_sizes,
                score_thresh, topk_per_class, nms_thresh, detections_per_img,
                topk_candidates):
    B, H, W, _ = images.shape

    # backbone: tiny 3x3 stride-2 conv + ReLU, NCHW output so the head kernel
    # gets channels on sublanes and spatial positions on lanes.
    feats = lax.conv_general_dilated(
        images, params["w_bb"], window_strides=(2, 2), padding=((1, 1), (1, 1)),
        dimension_numbers=("NHWC", "HWIO", "NCHW"))
    feats = jax.nn.relu(feats + params["b_bb"].reshape(1, -1, 1, 1))
    feats = feats.astype(jnp.bfloat16)                   # bf16 before padding
    Cfeat, Hf, Wf = feats.shape[1], feats.shape[2], feats.shape[3]
    WP = Wf + 2

    # lane-dense geometry: n_lanes covers every Hf*(Wf+2) output position;
    # the flat input must reach the largest 3x3 tap shift past the last lane.
    n_lanes = _round_up(Hf * WP, 128)
    flat_needed = 2 * WP + 2 + n_lanes
    HPP = max(Hf + 2, -(-flat_needed // WP))             # rows incl. halo+tail
    flat_in = HPP * WP

    # ONE merged pad: 3x3 halo (top/left/right = 1) plus extra bottom rows that
    # double as the flat-tail padding; then flatten spatial dims. No HBM im2col.
    xp = jnp.pad(feats, ((0, 0), (0, 0), (1, HPP - Hf - 1), (1, 1)))
    feat_flat = xp.reshape(B, Cfeat, flat_in)

    cls_pad = _round_up(num_anchors * num_classes, 8)    # 8-aligned box-row start
    w_packed = _pack_head_weights(params["w_cls"], params["w_box"],
                                  params["b_cls"], params["b_box"],
                                  cls_pad=cls_pad)
    anchors_flat = _make_anchors_flat(Hf, Wf, WP, float(H), float(W),
                                      anchor_sizes, n_lanes)
    shifts = tuple(i * WP + j for i in range(3) for j in range(3))

    scores_pad, boxes_pad = ssd_head_fused(
        feat_flat, w_packed, anchors_flat, shifts=shifts,
        num_anchors=num_anchors, num_classes=num_classes, cls_pad=cls_pad,
        img_h=float(H), img_w=float(W))

    # drop padded-width garbage columns, go to torchvision's [B, HWA, .] order.
    HW = Hf * Wf
    scores_hw = _compact_lanes(scores_pad, Hf, Wf)       # [B, A*C, HW]
    boxes_hw = _compact_lanes(boxes_pad, Hf, Wf)         # [B, A*4, HW]
    pred_scores = scores_hw.reshape(B, num_anchors, num_classes, HW)
    pred_scores = pred_scores.transpose(0, 3, 1, 2).reshape(
        B, HW * num_anchors, num_classes)
    boxes = boxes_hw.reshape(B, num_anchors, 4, HW)
    boxes = boxes.transpose(0, 3, 1, 2).reshape(B, HW * num_anchors, 4)

    post = functools.partial(
        _postprocess_image, score_thresh=score_thresh,
        k_per_class=topk_per_class, nms_thresh=nms_thresh,
        detections_per_img=detections_per_img, topk_candidates=topk_candidates)
    return jax.vmap(post)(pred_scores, boxes)


# ---------------------------------- main -------------------------------------

if __name__ == "__main__":
    key = jax.random.PRNGKey(0)
    B, H, W, Cin = 2, 32, 32, 3
    Cfeat = 16
    num_anchors = 2
    num_classes = 4

    k_img, k1, k2, k3, k4, k5, k6 = jax.random.split(key, 7)
    # Post-transform images (GeneralizedRCNNTransform normalize/resize treated
    # as identity for this synthetic setup).  layout: NHWC.
    images = jax.random.normal(k_img, (B, H, W, Cin), jnp.float32)
    params = {
        "w_bb": jax.random.normal(k1, (3, 3, Cin, Cfeat), jnp.float32) * 0.1,
        "b_bb": jax.random.normal(k2, (Cfeat,), jnp.float32) * 0.1,
        "w_cls": jax.random.normal(
            k3, (3, 3, Cfeat, num_anchors * num_classes), jnp.float32) * 0.1,
        "b_cls": jax.random.normal(
            k4, (num_anchors * num_classes,), jnp.float32) * 0.1,
        "w_box": jax.random.normal(
            k5, (3, 3, Cfeat, num_anchors * 4), jnp.float32) * 0.1,
        "b_box": jax.random.normal(k6, (num_anchors * 4,), jnp.float32) * 0.1,
    }

    forward = jax.jit(functools.partial(
        ssd_forward,
        num_anchors=num_anchors, num_classes=num_classes,
        anchor_sizes=(4.0, 8.0),
        # backend post-processing params (scaled-down torchvision SSD defaults)
        score_thresh=0.01, topk_per_class=64, nms_thresh=0.45,
        detections_per_img=32,
        topk_candidates=2))   # SSDClassScoresExtractor(topk_candidates=2)

    det = forward(images, params)
    # per-image dicts, mirroring the module's List[Dict[str, Tensor]] output.
    detections = [{name: val[b] for name, val in det.items()} for b in range(B)]
    # TODO(synk): transform.postprocess box rescaling is identity here (no resize).

    jax.block_until_ready(detections)
    print("KERNEL_OK")
</pallas_src>

<mosaic_0001>
module attributes {stable_mosaic.version = 11 : i64} {
  func.func @_ssd_head_kernel(%arg0: i32, %arg1: memref<1x16x432xbf16, #tpu.memory_space<vmem>>, %arg2: memref<16x160xbf16, #tpu.memory_space<vmem>>, %arg3: memref<8x384xf32, #tpu.memory_space<vmem>>, %arg4: memref<1x8x384xf32, #tpu.memory_space<vmem>>, %arg5: memref<1x8x384xf32, #tpu.memory_space<vmem>>, %arg6: memref<160x384xbf16, #tpu.memory_space<vmem>>) attributes {dimension_semantics = [#tpu.dimension_semantics<parallel>], iteration_bounds = array<i64: 2>, scalar_prefetch = 0 : i64, scratch_operands = 1 : i64, tpu.core_type = #tpu.core_type<tc>, window_params = [{transform_indices = @transform_0, window_bounds = array<i64: 1, 16, 432>}, {pipeline_mode = #tpu.pipeline_mode<synchronous>, transform_indices = @transform_1, window_bounds = array<i64: 16, 160>}, {pipeline_mode = #tpu.pipeline_mode<synchronous>, transform_indices = @transform_2, window_bounds = array<i64: 8, 384>}, {transform_indices = @transform_3, window_bounds = array<i64: 1, 8, 384>}, {transform_indices = @transform_4, window_bounds = array<i64: 1, 8, 384>}]} {
    %c0 = arith.constant 0 : index
    %c0_0 = arith.constant 0 : index
    %c0_1 = arith.constant 0 : index
    %0 = vector.load %arg1[%c0, %c0_0, %c0_1] : memref<1x16x432xbf16, #tpu.memory_space<vmem>>, vector<1x16x432xbf16>
    %1 = vector.shape_cast %0 : vector<1x16x432xbf16> to vector<16x432xbf16>
    %2 = vector.extract_strided_slice %1 {offsets = [0, 0], sizes = [16, 384], strides = [1, 1]} : vector<16x432xbf16> to vector<16x384xbf16>
    %c0_2 = arith.constant 0 : index
    %c0_3 = arith.constant 0 : index
    %3 = vector.load %arg6[%c0_2, %c0_3] : memref<160x384xbf16, #tpu.memory_space<vmem>>, vector<16x384xbf16>
    tpu.vector_store %arg6[%c0_2, %c0_3], %2 {strides = array<i32>} : memref<160x384xbf16, #tpu.memory_space<vmem>>, vector<16x384xbf16>,
    %4 = vector.extract_strided_slice %1 {offsets = [0, 1], sizes = [16, 384], strides = [1, 1]} : vector<16x432xbf16> to vector<16x384xbf16>
    %c16 = arith.constant 16 : index
    %c0_4 = arith.constant 0 : index
    %5 = vector.load %arg6[%c16, %c0_4] : memref<160x384xbf16, #tpu.memory_space<vmem>>, vector<16x384xbf16>
    tpu.vector_store %arg6[%c16, %c0_4], %4 {strides = array<i32>} : memref<160x384xbf16, #tpu.memory_space<vmem>>, vector<16x384xbf16>,
    %6 = vector.extract_strided_slice %1 {offsets = [0, 2], sizes = [16, 384], strides = [1, 1]} : vector<16x432xbf16> to vector<16x384xbf16>
    %c32 = arith.constant 32 : index
    %c0_5 = arith.constant 0 : index
    %7 = vector.load %arg6[%c32, %c0_5] : memref<160x384xbf16, #tpu.memory_space<vmem>>, vector<16x384xbf16>
    tpu.vector_store %arg6[%c32, %c0_5], %6 {strides = array<i32>} : memref<160x384xbf16, #tpu.memory_space<vmem>>, vector<16x384xbf16>,
    %8 = vector.extract_strided_slice %1 {offsets = [0, 18], sizes = [16, 384], strides = [1, 1]} : vector<16x432xbf16> to vector<16x384xbf16>
    %c48 = arith.constant 48 : index
    %c0_6 = arith.constant 0 : index
    %9 = vector.load %arg6[%c48, %c0_6] : memref<160x384xbf16, #tpu.memory_space<vmem>>, vector<16x384xbf16>
    tpu.vector_store %arg6[%c48, %c0_6], %8 {strides = array<i32>} : memref<160x384xbf16, #tpu.memory_space<vmem>>, vector<16x384xbf16>,
    %10 = vector.extract_strided_slice %1 {offsets = [0, 19], sizes = [16, 384], strides = [1, 1]} : vector<16x432xbf16> to vector<16x384xbf16>
    %c64 = arith.constant 64 : index
    %c0_7 = arith.constant 0 : index
    %11 = vector.load %arg6[%c64, %c0_7] : memref<160x384xbf16, #tpu.memory_space<vmem>>, vector<16x384xbf16>
    tpu.vector_store %arg6[%c64, %c0_7], %10 {strides = array<i32>} : memref<160x384xbf16, #tpu.memory_space<vmem>>, vector<16x384xbf16>,
    %12 = vector.extract_strided_slice %1 {offsets = [0, 20], sizes = [16, 384], strides = [1, 1]} : vector<16x432xbf16> to vector<16x384xbf16>
    %c80 = arith.constant 80 : index
    %c0_8 = arith.constant 0 : index
    %13 = vector.load %arg6[%c80, %c0_8] : memref<160x384xbf16, #tpu.memory_space<vmem>>, vector<16x384xbf16>
    tpu.vector_store %arg6[%c80, %c0_8], %12 {strides = array<i32>} : memref<160x384xbf16, #tpu.memory_space<vmem>>, vector<16x384xbf16>,
    %14 = vector.extract_strided_slice %1 {offsets = [0, 36], sizes = [16, 384], strides = [1, 1]} : vector<16x432xbf16> to vector<16x384xbf16>
    %c96 = arith.constant 96 : index
    %c0_9 = arith.constant 0 : index
    %15 = vector.load %arg6[%c96, %c0_9] : memref<160x384xbf16, #tpu.memory_space<vmem>>, vector<16x384xbf16>
    tpu.vector_store %arg6[%c96, %c0_9], %14 {strides = array<i32>} : memref<160x384xbf16, #tpu.memory_space<vmem>>, vector<16x384xbf16>,
    %16 = vector.extract_strided_slice %1 {offsets = [0, 37], sizes = [16, 384], strides = [1, 1]} : vector<16x432xbf16> to vector<16x384xbf16>
    %c112 = arith.constant 112 : index
    %c0_10 = arith.constant 0 : index
    %17 = vector.load %arg6[%c112, %c0_10] : memref<160x384xbf16, #tpu.memory_space<vmem>>, vector<16x384xbf16>
    tpu.vector_store %arg6[%c112, %c0_10], %16 {strides = array<i32>} : memref<160x384xbf16, #tpu.memory_space<vmem>>, vector<16x384xbf16>,
    %18 = vector.extract_strided_slice %1 {offsets = [0, 38], sizes = [16, 384], strides = [1, 1]} : vector<16x432xbf16> to vector<16x384xbf16>
    %c128 = arith.constant 128 : index
    %c0_11 = arith.constant 0 : index
    %19 = vector.load %arg6[%c128, %c0_11] : memref<160x384xbf16, #tpu.memory_space<vmem>>, vector<16x384xbf16>
    tpu.vector_store %arg6[%c128, %c0_11], %18 {strides = array<i32>} : memref<160x384xbf16, #tpu.memory_space<vmem>>, vector<16x384xbf16>,
    %cst = arith.constant 1.000000e+00 : bf16
    %20 = vector.broadcast %cst : bf16 to vector<16x384xbf16>
    %c144 = arith.constant 144 : index
    %c0_12 = arith.constant 0 : index
    %21 = vector.load %arg6[%c144, %c0_12] : memref<160x384xbf16, #tpu.memory_space<vmem>>, vector<16x384xbf16>
    tpu.vector_store %arg6[%c144, %c0_12], %20 {strides = array<i32>} : memref<160x384xbf16, #tpu.memory_space<vmem>>, vector<16x384xbf16>,
    %c0_13 = arith.constant 0 : index
    %c0_14 = arith.constant 0 : index
    %22 = vector.load %arg2[%c0_13, %c0_14] : memref<16x160xbf16, #tpu.memory_space<vmem>>, vector<16x160xbf16>
    %c0_15 = arith.constant 0 : index
    %c0_16 = arith.constant 0 : index
    %23 = vector.load %arg6[%c0_15, %c0_16] : memref<160x384xbf16, #tpu.memory_space<vmem>>, vector<160x384xbf16>
    %cst_17 = arith.constant dense<0.000000e+00> : vector<16x384xf32>
    %24 = tpu.matmul %22, %23, %cst_17 {dimension_numbers = #tpu.dot_dimension_numbers<[1], [0], [0], [1], [0, 0, 1, 1], [], []>} : vector<16x160xbf16>, vector<160x384xbf16>, vector<16x384xf32> -> vector<16x384xf32>
    %25 = vector.extract_strided_slice %24 {offsets = [0, 0], sizes = [8, 384], strides = [1, 1]} : vector<16x384xf32> to vector<8x384xf32>
    %26 = vector.shape_cast %25 : vector<8x384xf32> to vector<2x4x384xf32>
    %cst_18 = arith.constant dense<0xFF800000> : vector<2x384xf32>
    %27 = vector.multi_reduction <maximumf>, %26, %cst_18 [1] : vector<2x4x384xf32> to vector<2x384xf32>
    %28 = vector.shape_cast %27 : vector<2x384xf32> to vector<2x1x384xf32>
    %29 = vector.broadcast %28 : vector<2x1x384xf32> to vector<2x4x384xf32>
    %30 = arith.subf %26, %29 : vector<2x4x384xf32>
    %31 = math.exp %30 : vector<2x4x384xf32>
    %cst_19 = arith.constant dense<0.000000e+00> : vector<2x384xf32>
    %32 = vector.multi_reduction <add>, %31, %cst_19 [1] : vector<2x4x384xf32> to vector<2x384xf32>
    %33 = vector.shape_cast %32 : vector<2x384xf32> to vector<2x1x384xf32>
    %34 = vector.broadcast %33 : vector<2x1x384xf32> to vector<2x4x384xf32>
    %35 = arith.divf %31, %34 : vector<2x4x384xf32>
    %36 = vector.shape_cast %35 : vector<2x4x384xf32> to vector<8x384xf32>
    %c0_20 = arith.constant 0 : index
    %c0_21 = arith.constant 0 : index
    %c0_22 = arith.constant 0 : index
    %37 = vector.load %arg4[%c0_20, %c0_21, %c0_22] : memref<1x8x384xf32, #tpu.memory_space<vmem>>, vector<1x8x384xf32>
    %38 = vector.shape_cast %37 : vector<1x8x384xf32> to vector<8x384xf32>
    %39 = vector.shape_cast %36 : vector<8x384xf32> to vector<1x8x384xf32>
    tpu.vector_store %arg4[%c0_20, %c0_21, %c0_22], %39 {strides = array<i32>} : memref<1x8x384xf32, #tpu.memory_space<vmem>>, vector<1x8x384xf32>,
    %40 = vector.extract_strided_slice %24 {offsets = [8, 0], sizes = [8, 384], strides = [1, 1]} : vector<16x384xf32> to vector<8x384xf32>
    %41 = vector.shape_cast %40 : vector<8x384xf32> to vector<2x4x384xf32>
    %c0_23 = arith.constant 0 : index
    %c0_24 = arith.constant 0 : index
    %42 = vector.load %arg3[%c0_23, %c0_24] : memref<8x384xf32, #tpu.memory_space<vmem>>, vector<8x384xf32>
    %43 = vector.shape_cast %42 : vector<8x384xf32> to vector<2x4x384xf32>
    %44 = vector.extract_strided_slice %43 {offsets = [0, 2, 0], sizes = [2, 1, 384], strides = [1, 1, 1]} : vector<2x4x384xf32> to vector<2x1x384xf32>
    %45 = vector.extract_strided_slice %43 {offsets = [0, 0, 0], sizes = [2, 1, 384], strides = [1, 1, 1]} : vector<2x4x384xf32> to vector<2x1x384xf32>
    %46 = arith.subf %44, %45 : vector<2x1x384xf32>
    %47 = vector.extract_strided_slice %43 {offsets = [0, 3, 0], sizes = [2, 1, 384], strides = [1, 1, 1]} : vector<2x4x384xf32> to vector<2x1x384xf32>
    %48 = vector.extract_strided_slice %43 {offsets = [0, 1, 0], sizes = [2, 1, 384], strides = [1, 1, 1]} : vector<2x4x384xf32> to vector<2x1x384xf32>
    %49 = arith.subf %47, %48 : vector<2x1x384xf32>
    %50 = vector.extract_strided_slice %43 {offsets = [0, 0, 0], sizes = [2, 1, 384], strides = [1, 1, 1]} : vector<2x4x384xf32> to vector<2x1x384xf32>
    %cst_25 = arith.constant 5.000000e-01 : f32
    %51 = vector.broadcast %cst_25 : f32 to vector<2x1x384xf32>
    %52 = arith.mulf %51, %46 : vector<2x1x384xf32>
    %53 = arith.addf %50, %52 : vector<2x1x384xf32>
    %54 = vector.extract_strided_slice %43 {offsets = [0, 1, 0], sizes = [2, 1, 384], strides = [1, 1, 1]} : vector<2x4x384xf32> to vector<2x1x384xf32>
    %cst_26 = arith.constant 5.000000e-01 : f32
    %55 = vector.broadcast %cst_26 : f32 to vector<2x1x384xf32>
    %56 = arith.mulf %55, %49 : vector<2x1x384xf32>
    %57 = arith.addf %54, %56 : vector<2x1x384xf32>
    %58 = vector.extract_strided_slice %41 {offsets = [0, 0, 0], sizes = [2, 1, 384], strides = [1, 1, 1]} : vector<2x4x384xf32> to vector<2x1x384xf32>
    %cst_27 = arith.constant 1.000000e-01 : f32
    %59 = vector.broadcast %cst_27 : f32 to vector<2x1x384xf32>
    %60 = arith.mulf %58, %59 : vector<2x1x384xf32>
    %61 = vector.extract_strided_slice %41 {offsets = [0, 1, 0], sizes = [2, 1, 384], strides = [1, 1, 1]} : vector<2x4x384xf32> to vector<2x1x384xf32>
    %cst_28 = arith.constant 1.000000e-01 : f32
    %62 = vector.broadcast %cst_28 : f32 to vector<2x1x384xf32>
    %63 = arith.mulf %61, %62 : vector<2x1x384xf32>
    %64 = vector.extract_strided_slice %41 {offsets = [0, 2, 0], sizes = [2, 2, 384], strides = [1, 1, 1]} : vector<2x4x384xf32> to vector<2x2x384xf32>
    %cst_29 = arith.constant 2.000000e-01 : f32
    %65 = vector.broadcast %cst_29 : f32 to vector<2x2x384xf32>
    %66 = arith.mulf %64, %65 : vector<2x2x384xf32>
    %cst_30 = arith.constant 4.13516665 : f32
    %67 = vector.broadcast %cst_30 : f32 to vector<2x2x384xf32>
    %68 = arith.minimumf %66, %67 : vector<2x2x384xf32>
    %69 = math.exp %68 : vector<2x2x384xf32>
    %70 = tpu.concatenate %46, %49 in 1 : vector<2x1x384xf32>, vector<2x1x384xf32> -> vector<2x2x384xf32>
    %71 = arith.mulf %69, %70 : vector<2x2x384xf32>
    %72 = vector.extract_strided_slice %71 {offsets = [0, 0, 0], sizes = [2, 1, 384], strides = [1, 1, 1]} : vector<2x2x384xf32> to vector<2x1x384xf32>
    %73 = vector.extract_strided_slice %71 {offsets = [0, 1, 0], sizes = [2, 1, 384], strides = [1, 1, 1]} : vector<2x2x384xf32> to vector<2x1x384xf32>
    %74 = arith.mulf %60, %46 : vector<2x1x384xf32>
    %75 = arith.addf %74, %53 : vector<2x1x384xf32>
    %76 = arith.mulf %63, %49 : vector<2x1x384xf32>
    %77 = arith.addf %76, %57 : vector<2x1x384xf32>
    %cst_31 = arith.constant 5.000000e-01 : f32
    %78 = vector.broadcast %cst_31 : f32 to vector<2x1x384xf32>
    %79 = arith.mulf %78, %72 : vector<2x1x384xf32>
    %80 = arith.subf %75, %79 : vector<2x1x384xf32>
    %cst_32 = arith.constant 0.000000e+00 : f32
    %cst_33 = arith.constant 3.200000e+01 : f32
    %81 = vector.broadcast %cst_32 : f32 to vector<2x1x384xf32>
    %82 = arith.maximumf %81, %80 : vector<2x1x384xf32>
    %83 = vector.broadcast %cst_33 : f32 to vector<2x1x384xf32>
    %84 = arith.minimumf %83, %82 : vector<2x1x384xf32>
    %cst_34 = arith.constant 5.000000e-01 : f32
    %85 = vector.broadcast %cst_34 : f32 to vector<2x1x384xf32>
    %86 = arith.mulf %85, %73 : vector<2x1x384xf32>
    %87 = arith.subf %77, %86 : vector<2x1x384xf32>
    %cst_35 = arith.constant 0.000000e+00 : f32
    %cst_36 = arith.constant 3.200000e+01 : f32
    %88 = vector.broadcast %cst_35 : f32 to vector<2x1x384xf32>
    %89 = arith.maximumf %88, %87 : vector<2x1x384xf32>
    %90 = vector.broadcast %cst_36 : f32 to vector<2x1x384xf32>
    %91 = arith.minimumf %90, %89 : vector<2x1x384xf32>
    %cst_37 = arith.constant 5.000000e-01 : f32
    %92 = vector.broadcast %cst_37 : f32 to vector<2x1x384xf32>
    %93 = arith.mulf %92, %72 : vector<2x1x384xf32>
    %94 = arith.addf %75, %93 : vector<2x1x384xf32>
    %cst_38 = arith.constant 0.000000e+00 : f32
    %cst_39 = arith.constant 3.200000e+01 : f32
    %95 = vector.broadcast %cst_38 : f32 to vector<2x1x384xf32>
    %96 = arith.maximumf %95, %94 : vector<2x1x384xf32>
    %97 = vector.broadcast %cst_39 : f32 to vector<2x1x384xf32>
    %98 = arith.minimumf %97, %96 : vector<2x1x384xf32>
    %cst_40 = arith.constant 5.000000e-01 : f32
    %99 = vector.broadcast %cst_40 : f32 to vector<2x1x384xf32>
    %100 = arith.mulf %99, %73 : vector<2x1x384xf32>
    %101 = arith.addf %77, %100 : vector<2x1x384xf32>
    %cst_41 = arith.constant 0.000000e+00 : f32
    %cst_42 = arith.constant 3.200000e+01 : f32
    %102 = vector.broadcast %cst_41 : f32 to vector<2x1x384xf32>
    %103 = arith.maximumf %102, %101 : vector<2x1x384xf32>
    %104 = vector.broadcast %cst_42 : f32 to vector<2x1x384xf32>
    %105 = arith.minimumf %104, %103 : vector<2x1x384xf32>
    %106 = tpu.concatenate %84, %91, %98, %105 in 1 : vector<2x1x384xf32>, vector<2x1x384xf32>, vector<2x1x384xf32>, vector<2x1x384xf32> -> vector<2x4x384xf32>
    %107 = vector.shape_cast %106 : vector<2x4x384xf32> to vector<8x384xf32>
    %c0_43 = arith.constant 0 : index
    %c0_44 = arith.constant 0 : index
    %c0_45 = arith.constant 0 : index
    %108 = vector.load %arg5[%c0_43, %c0_44, %c0_45] : memref<1x8x384xf32, #tpu.memory_space<vmem>>, vector<1x8x384xf32>
    %109 = vector.shape_cast %108 : vector<1x8x384xf32> to vector<8x384xf32>
    %110 = vector.shape_cast %107 : vector<8x384xf32> to vector<1x8x384xf32>
    tpu.vector_store %arg5[%c0_43, %c0_44, %c0_45], %110 {strides = array<i32>} : memref<1x8x384xf32, #tpu.memory_space<vmem>>, vector<1x8x384xf32>,
    return
  }
  func.func @transform_0(%arg0: i32) -> (i32, i32, i32) {
    %c0_i32 = arith.constant 0 : i32
    %c0_i32_0 = arith.constant 0 : i32
    %c0_i32_1 = arith.constant 0 : i32
    return %arg0, %c0_i32, %c0_i32_0 : i32, i32, i32
  }
  func.func @transform_1(%arg0: i32) -> (i32, i32) {
    %c0_i32 = arith.constant 0 : i32
    %c0_i32_0 = arith.constant 0 : i32
    %c0_i32_1 = arith.constant 0 : i32
    return %c0_i32, %c0_i32_0 : i32, i32
  }
  func.func @transform_2(%arg0: i32) -> (i32, i32) {
    %c0_i32 = arith.constant 0 : i32
    %c0_i32_0 = arith.constant 0 : i32
    %c0_i32_1 = arith.constant 0 : i32
    return %c0_i32, %c0_i32_0 : i32, i32
  }
  func.func @transform_3(%arg0: i32) -> (i32, i32, i32) {
    %c0_i32 = arith.constant 0 : i32
    %c0_i32_0 = arith.constant 0 : i32
    %c0_i32_1 = arith.constant 0 : i32
    return %arg0, %c0_i32, %c0_i32_0 : i32, i32, i32
  }
  func.func @transform_4(%arg0: i32) -> (i32, i32, i32) {
    %c0_i32 = arith.constant 0 : i32
    %c0_i32_0 = arith.constant 0 : i32
    %c0_i32_1 = arith.constant 0 : i32
    return %arg0, %c0_i32, %c0_i32_0 : i32, i32, i32
  }
}

</mosaic_0001>

<llo_original>
// kernel: ssd_forward.1
$region0: #{ssd_forward.1}
  #allocation0 [shape = 'u32[]', space=smem, size = 0x4, offset = 0x4, fixed_abs, tag = 'smem constant byte address 0x4 - core index']
  #allocation1 [shape = 'u32[144,128]{1,0:T(1,128)}', space=vmem, size = 0x12000, scoped, tag = 'internal scratch']
  #allocation2 [shape = 'bf16[160,384]{1,0:T(16,128)(2,1)}', space=vmem, size = 0x1e000, scoped, tag = 'scratch operand']
  %s0 = inlined_call_operand.vmem [shape: bf16[2,16,432], index: 0, kind: input, shape index: {}]
  %s1 = inlined_call_operand.vmem [shape: bf16[16,160], index: 1, kind: input, shape index: {}]
  %s2 = inlined_call_operand.vmem [shape: f32[8,384], index: 2, kind: input, shape index: {}]
  %s3 = inlined_call_operand.vmem [shape: f32[2,8,384], index: 3, kind: output, shape index: {0}]
  %s4 = inlined_call_operand.vmem [shape: f32[2,8,384], index: 4, kind: output, shape index: {1}]
  %5 = xla_tuple %s3, %s4
  %s6 = sld [smem:[#allocation0]]
  $region53: #{ssd_forward.1} parent=0
    _
  %s8 = ssub.s32 1, %s6
  %s9 = scalar_select 0, %s8, %s6
  loop: start=0, step=1, limit=4
  $region2: #{ssd_forward.1} parent=0 // loop_pre_header
    _
  $region3: #{ssd_forward.1} parent=0 // loop_header
    %s11 = sphi 0, %s15
    %p12 = scmp.ge.s32.totalorder %s11, 4
    %s21 = sphi 0, %s23
    %s24 = sphi 0, %s21
    %s25 = sphi 0, %s24
    %s41 = sphi 0, %s25
    %s45 = sphi 0, %s45
    %s47 = sphi 0, %s45
    %s48 = sphi 0, %s47
    %s62 = sphi 0, %s48
    %s66 = sphi 0, %s66
    %s68 = sphi 0, %s66
    %s69 = sphi 0, %s68
    %s83 = sphi 0, %s69
    %s89 = sphi 0, %s91
    %s92 = sphi 0, %s89
    %s93 = sphi 0, %s92
    %s109 = sphi 0, %s93
    %s115 = sphi 0, %s117
    %s118 = sphi 0, %s115
    %s119 = sphi 0, %s118
    %s135 = sphi 0, %s119
  $region4: #{ssd_forward.1} parent=0 // loop_header_branch
    %14 = sbr.rel (%p12) target = $region8
  $region5: #{ssd_forward.1} parent=0 // loop_body
    %s16 = ssub.s32 %s11, 1
    %s17 = ssub.s32 %s11, 2
    %s18 = sadd.s32 %s11, 1
    %s19 = ssub.s32 %s11, %s18
    %p20 = scmp.eq.s32.totalorder %s19, 0
    %s22 = sadd.s32 %s21, 1
    %s23 = scalar_select %p20, %s21, %s22
    %p26 = pneg %p20
    %p27 = scmp.eq.s32.totalorder %s11, 1
    %p28 = por %p26, %p27
    %p29 = scmp.ne.s32.totalorder %s21, %s24
    %p30 = scmp.eq.s32.totalorder %s11, 0
    %p31 = por %p29, %p30
    %p32 = scmp.ne.s32.totalorder %s21, %s24
    %p33 = scmp.eq.s32.totalorder %s16, 1
    %p34 = por %p32, %p33
    %p35 = scmp.ne.s32.totalorder %s24, %s25
    %p36 = scmp.eq.s32.totalorder %s16, 0
    %p37 = por %p35, %p36
    %p38 = scmp.ne.s32.totalorder %s24, %s25
    %p39 = scmp.eq.s32.totalorder %s17, 1
    %p40 = por %p38, %p39
    %p42 = scmp.ne.s32.totalorder %s25, %s41
    %p43 = scmp.eq.s32.totalorder %s17, 0
    %p44 = por %p42, %p43
    %s46 = sadd.s32 %s45, 1
    %p49 = scmp.eq.s32.totalorder %s11, 1
    %p50 = scmp.ne.s32.totalorder %s45, %s47
    %p51 = scmp.eq.s32.totalorder %s11, 0
    %p52 = por %p50, %p51
    %p53 = scmp.ne.s32.totalorder %s45, %s47
    %p54 = scmp.eq.s32.totalorder %s16, 1
    %p55 = por %p53, %p54
    %p56 = scmp.ne.s32.totalorder %s47, %s48
    %p57 = scmp.eq.s32.totalorder %s16, 0
    %p58 = por %p56, %p57
    %p59 = scmp.ne.s32.totalorder %s47, %s48
    %p60 = scmp.eq.s32.totalorder %s17, 1
    %p61 = por %p59, %p60
    %p63 = scmp.ne.s32.totalorder %s48, %s62
    %p64 = scmp.eq.s32.totalorder %s17, 0
    %p65 = por %p63, %p64
    %s67 = sadd.s32 %s66, 1
    %p70 = scmp.eq.s32.totalorder %s11, 1
    %p71 = scmp.ne.s32.totalorder %s66, %s68
    %p72 = scmp.eq.s32.totalorder %s11, 0
    %p73 = por %p71, %p72
    %p74 = scmp.ne.s32.totalorder %s66, %s68
    %p75 = scmp.eq.s32.totalorder %s16, 1
    %p76 = por %p74, %p75
    %p77 = scmp.ne.s32.totalorder %s68, %s69
    %p78 = scmp.eq.s32.totalorder %s16, 0
    %p79 = por %p77, %p78
    %p80 = scmp.ne.s32.totalorder %s68, %s69
    %p81 = scmp.eq.s32.totalorder %s17, 1
    %p82 = por %p80, %p81
    %p84 = scmp.ne.s32.totalorder %s69, %s83
    %p85 = scmp.eq.s32.totalorder %s17, 0
    %p86 = por %p84, %p85
    %s87 = ssub.s32 %s11, %s18
    %p88 = scmp.eq.s32.totalorder %s87, 0
    %s90 = sadd.s32 %s89, 1
    %s91 = scalar_select %p88, %s89, %s90
    %p94 = pneg %p88
    %p95 = scmp.eq.s32.totalorder %s11, 1
    %p96 = por %p94, %p95
    %p97 = scmp.ne.s32.totalorder %s89, %s92
    %p98 = scmp.eq.s32.totalorder %s11, 0
    %p99 = por %p97, %p98
    %p100 = scmp.ne.s32.totalorder %s89, %s92
    %p101 = scmp.eq.s32.totalorder %s16, 1
    %p102 = por %p100, %p101
    %p103 = scmp.ne.s32.totalorder %s92, %s93
    %p104 = scmp.eq.s32.totalorder %s16, 0
    %p105 = por %p103, %p104
    %p106 = scmp.ne.s32.totalorder %s92, %s93
    %p107 = scmp.eq.s32.totalorder %s17, 1
    %p108 = por %p106, %p107
    %p110 = scmp.ne.s32.totalorder %s93, %s109
    %p111 = scmp.eq.s32.totalorder %s17, 0
    %p112 = por %p110, %p111
    %s113 = ssub.s32 %s11, %s18
    %p114 = scmp.eq.s32.totalorder %s113, 0
    %s116 = sadd.s32 %s115, 1
    %s117 = scalar_select %p114, %s115, %s116
    %p120 = pneg %p114
    %p121 = scmp.eq.s32.totalorder %s11, 1
    %p122 = por %p120, %p121
    %p123 = scmp.ne.s32.totalorder %s115, %s118
    %p124 = scmp.eq.s32.totalorder %s11, 0
    %p125 = por %p123, %p124
    %p126 = scmp.ne.s32.totalorder %s115, %s118
    %p127 = scmp.eq.s32.totalorder %s16, 1
    %p128 = por %p126, %p127
    %p129 = scmp.ne.s32.totalorder %s118, %s119
    %p130 = scmp.eq.s32.totalorder %s16, 0
    %p131 = por %p129, %p130
    %p132 = scmp.ne.s32.totalorder %s118, %s119
    %p133 = scmp.eq.s32.totalorder %s17, 1
    %p134 = por %p132, %p133
    %p136 = scmp.ne.s32.totalorder %s119, %s135
    %p137 = scmp.eq.s32.totalorder %s17, 0
    %p138 = por %p136, %p137
    %p139 = scmp.le.s32.totalorder 1, %s11
    %p140 = scmp.lt.s32.totalorder %s11, 3
    %p141 = pnand %p139, %p140
    %p142 = pneg %p141
    // Predicated region
    $region9: #{ssd_forward.1} parent=5 // pred_check
      _
    $region10: #{ssd_forward.1} parent=5 // pred_check_branch
      %144 = sbr.rel (%p141) target = $region12
    $region11: #{ssd_forward.1} parent=5 // pred_region
      %s145 = ssub.s32 %s11, 1
      // Predicated region
      $region13: #{ssd_forward.1} parent=11 // pred_check
        %p146 = pneg %p58
      $region14: #{ssd_forward.1} parent=11 // pred_check_branch
        %148 = sbr.rel (%p146) target = $region16
      $region15: #{ssd_forward.1} parent=11 // pred_region
        _
      $region16: #{ssd_forward.1} parent=11 // pred_fallthru
        _
      // Predicated region
      $region17: #{ssd_forward.1} parent=11 // pred_check
        %p149 = pneg %p79
      $region18: #{ssd_forward.1} parent=11 // pred_check_branch
        %151 = sbr.rel (%p149) target = $region20
      $region19: #{ssd_forward.1} parent=11 // pred_region
        _
      $region20: #{ssd_forward.1} parent=11 // pred_fallthru
        _
    $region12: #{ssd_forward.1} parent=5 // pred_fallthru
      _
    %p152 = scmp.lt.s32.totalorder %s11, 2
    // Predicated region
    $region21: #{ssd_forward.1} parent=5 // pred_check
      %p153 = pneg %p152
    $region22: #{ssd_forward.1} parent=5 // pred_check_branch
      %155 = sbr.rel (%p153) target = $region24
    $region23: #{ssd_forward.1} parent=5 // pred_region
      // Predicated region
      $region25: #{ssd_forward.1} parent=23 // pred_check
        %p156 = pneg %p31
      $region26: #{ssd_forward.1} parent=23 // pred_check_branch
        %158 = sbr.rel (%p156) target = $region28
      $region27: #{ssd_forward.1} parent=23 // pred_region
        %p159 = scmp.lt.s32.totalorder %s11, 1
        %s160 = scalar_select %p159, %s11, 1
        %s161 = smul.addr %s160, 8
        %s162 = smul.addr %s161, 4
        %s163 = scalar_lea.vmem %s0, %s162
      $region28: #{ssd_forward.1} parent=23 // pred_fallthru
        _
    $region24: #{ssd_forward.1} parent=5 // pred_fallthru
      _
    %p164 = scmp.le.s32.totalorder 1, %s11
    %p165 = scmp.lt.s32.totalorder %s11, 3
    %p166 = pnand %p164, %p165
    %p167 = pneg %p166
    // Predicated region
    $region29: #{ssd_forward.1} parent=5 // pred_check
      _
    $region30: #{ssd_forward.1} parent=5 // pred_check_branch
      %169 = sbr.rel (%p166) target = $region32
    $region31: #{ssd_forward.1} parent=5 // pred_region
      %s170 = ssub.s32 %s11, 1
      %p171 = scmp.lt.s32.totalorder %s16, 1
      %s172 = scalar_select %p171, %s16, 1
      %s173 = smul.addr %s172, 8
      %s174 = smul.addr %s173, 4
      %s175 = scalar_lea.vmem %s0, %s174
      %p176 = pneg %p37
      %p177 = pneg %p34
      %p178 = pneg %p58
      %p179 = pneg %p55
      %p180 = pneg %p79
      %p181 = pneg %p76
      %p182 = pneg %p105
      %p183 = pneg %p102
      %p184 = scmp.lt.s32.totalorder %s16, 1
      %s185 = scalar_select %p184, %s16, 1
      %s186 = smul.addr %s185, 3
      %s187 = smul.addr %s186, 8
      %s188 = scalar_lea.vmem %s3, %s187
      %p189 = pneg %p131
      %p190 = pneg %p128
      %p191 = scmp.lt.s32.totalorder %s16, 1
      %s192 = scalar_select %p191, %s16, 1
      %s193 = smul.addr %s192, 3
      %s194 = smul.addr %s193, 8
      %s195 = scalar_lea.vmem %s4, %s194
      %p196 = scmp.lt.s32.totalorder %s16, 1
      %s197 = scalar_select %p196, %s16, 1
      %s198 = smul.addr %s197, 8
      %s199 = smul.addr %s198, 4
      %s200 = scalar_lea.vmem %s0, %s199
      %p201 = scmp.lt.s32.totalorder %s16, 1
      %s202 = scalar_select %p201, %s16, 1
      %s203 = smul.addr %s202, 3
      %s204 = smul.addr %s203, 8
      %s205 = scalar_lea.vmem %s3, %s204
      %p206 = scmp.lt.s32.totalorder %s16, 1
      %s207 = scalar_select %p206, %s16, 1
      %s208 = smul.addr %s207, 3
      %s209 = smul.addr %s208, 8
      %s210 = scalar_lea.vmem %s4, %s209
      %v213 = vld [vmem:[%s200] sm:$0xff]
      %v214 = vld [vmem:[%s200 + $0x8] sm:$0xff]
      %v215 = vld [vmem:[%s200 + $0x10] sm:$0xff]
      %v216 = vld [vmem:[%s200 + $0x18] sm:$0xff]
      %v221 = vunpack.c.l.b16 %v213
      %v222 = vunpack.c.h.b16 %v213
      %v223 = vunpack.c.l.b16 %v214
      %v224 = vunpack.c.l.b16 %v215
      %v225 = vunpack.c.h.b16 %v215
      %v226 = vunpack.c.l.b16 %v216
      %v227 = vpack.c.b16 %v224, %v221
      %v228 = vpack.c.b16 %v225, %v222
      %v229 = vpack.c.b16 %v226, %v223
      %233 = vst [vmem:[#allocation2] sm:$0xff] %v227
      %234 = vst [vmem:[#allocation2 + $0x8] sm:$0xff] %v228
      %235 = vst [vmem:[#allocation2 + $0x10] sm:$0xff] %v229
      %v236 = vunpack.c.h.b16 %v214
      %v237 = vunpack.c.h.b16 %v216
      %v238 = vpack.c.b16 %v237, %v236
      %239 = vrot.lane.b32.xlu0 %v227, 127
      %v240 = vpop.permute.xlu0 %239
      %241 = vrot.lane.b32.xlu0 %v228, 127
      %v242 = vpop.permute.xlu0 %241
      %243 = vrot.lane.b32.xlu0 %v229, 127
      %v244 = vpop.permute.xlu0 %243
      %245 = vrot.lane.b32.xlu0 %v238, 127
      %v246 = vpop.permute.xlu0 %245
      %vm247 = vcmask 1039360
      %v248 = vsel %vm247, %v240, %v242
      %v249 = vsel %vm247, %v242, %v244
      %v250 = vsel %vm247, %v244, %v246
      %254 = vst [vmem:[#allocation2 + $0x18] sm:$0xff] %v248
      %255 = vst [vmem:[#allocation2 + $0x20] sm:$0xff] %v249
      %256 = vst [vmem:[#allocation2 + $0x28] sm:$0xff] %v250
      %257 = vrot.lane.b32.xlu0 %v227, 126
      %v258 = vpop.permute.xlu0 %257
      %259 = vrot.lane.b32.xlu0 %v228, 126
      %v260 = vpop.permute.xlu0 %259
      %261 = vrot.lane.b32.xlu0 %v229, 126
      %v262 = vpop.permute.xlu0 %261
      %263 = vrot.lane.b32.xlu0 %v238, 126
      %v264 = vpop.permute.xlu0 %263
      %vm265 = vcmask 1031168
      %v266 = vsel %vm265, %v258, %v260
      %v267 = vsel %vm265, %v260, %v262
      %v268 = vsel %vm265, %v262, %v264
      %272 = vst [vmem:[#allocation2 + $0x30] sm:$0xff] %v266
      %273 = vst [vmem:[#allocation2 + $0x38] sm:$0xff] %v267
      %274 = vst [vmem:[#allocation2 + $0x40] sm:$0xff] %v268
      %275 = vrot.lane.b32.xlu0 %v227, 110
      %v276 = vpop.permute.xlu0 %275
      %277 = vrot.lane.b32.xlu0 %v228, 110
      %v278 = vpop.permute.xlu0 %277
      %279 = vrot.lane.b32.xlu0 %v229, 110
      %v280 = vpop.permute.xlu0 %279
      %281 = vrot.lane.b32.xlu0 %v238, 110
      %v282 = vpop.permute.xlu0 %281
      %vm283 = vcmask 900096
      %v284 = vsel %vm283, %v276, %v278
      %v285 = vsel %vm283, %v278, %v280
      %v286 = vsel %vm283, %v280, %v282
      %290 = vst [vmem:[#allocation2 + $0x48] sm:$0xff] %v284
      %291 = vst [vmem:[#allocation2 + $0x50] sm:$0xff] %v285
      %292 = vst [vmem:[#allocation2 + $0x58] sm:$0xff] %v286
      %293 = vrot.lane.b32.xlu0 %v227, 109
      %v294 = vpop.permute.xlu0 %293
      %295 = vrot.lane.b32.xlu0 %v228, 109
      %v296 = vpop.permute.xlu0 %295
      %297 = vrot.lane.b32.xlu0 %v229, 109
      %v298 = vpop.permute.xlu0 %297
      %299 = vrot.lane.b32.xlu0 %v238, 109
      %v300 = vpop.permute.xlu0 %299
      %vm301 = vcmask 891904
      %v302 = vsel %vm301, %v294, %v296
      %v303 = vsel %vm301, %v296, %v298
      %v304 = vsel %vm301, %v298, %v300
      %308 = vst [vmem:[#allocation2 + $0x60] sm:$0xff] %v302
      %309 = vst [vmem:[#allocation2 + $0x68] sm:$0xff] %v303
      %310 = vst [vmem:[#allocation2 + $0x70] sm:$0xff] %v304
      %311 = vrot.lane.b32.xlu0 %v227, 108
      %v312 = vpop.permute.xlu0 %311
      %313 = vrot.lane.b32.xlu0 %v228, 108
      %v314 = vpop.permute.xlu0 %313
      %315 = vrot.lane.b32.xlu0 %v229, 108
      %v316 = vpop.permute.xlu0 %315
      %317 = vrot.lane.b32.xlu0 %v238, 108
      %v318 = vpop.permute.xlu0 %317
      %vm319 = vcmask 883712
      %v320 = vsel %vm319, %v312, %v314
      %v321 = vsel %vm319, %v314, %v316
      %v322 = vsel %vm319, %v316, %v318
      %326 = vst [vmem:[#allocation2 + $0x78] sm:$0xff] %v320
      %327 = vst [vmem:[#allocation2 + $0x80] sm:$0xff] %v321
      %328 = vst [vmem:[#allocation2 + $0x88] sm:$0xff] %v322
      %329 = vrot.lane.b32.xlu0 %v227, 92
      %v330 = vpop.permute.xlu0 %329
      %331 = vrot.lane.b32.xlu0 %v228, 92
      %v332 = vpop.permute.xlu0 %331
      %333 = vrot.lane.b32.xlu0 %v229, 92
      %v334 = vpop.permute.xlu0 %333
      %335 = vrot.lane.b32.xlu0 %v238, 92
      %v336 = vpop.permute.xlu0 %335
      %vm337 = vcmask 752640
      %v338 = vsel %vm337, %v330, %v332
      %v339 = vsel %vm337, %v332, %v334
      %v340 = vsel %vm337, %v334, %v336
      %344 = vst [vmem:[#allocation2 + $0x90] sm:$0xff] %v338
      %345 = vst [vmem:[#allocation2 + $0x98] sm:$0xff] %v339
      %346 = vst [vmem:[#allocation2 + $0xa0] sm:$0xff] %v340
      %347 = vrot.lane.b32.xlu0 %v227, 91
      %v348 = vpop.permute.xlu0 %347
      %349 = vrot.lane.b32.xlu0 %v228, 91
      %v350 = vpop.permute.xlu0 %349
      %351 = vrot.lane.b32.xlu0 %v229, 91
      %v352 = vpop.permute.xlu0 %351
      %353 = vrot.lane.b32.xlu0 %v238, 91
      %v354 = vpop.permute.xlu0 %353
      %vm355 = vcmask 744448
      %v356 = vsel %vm355, %v348, %v350
      %v357 = vsel %vm355, %v350, %v352
      %v358 = vsel %vm355, %v352, %v354
      %362 = vst [vmem:[#allocation2 + $0xa8] sm:$0xff] %v356
      %363 = vst [vmem:[#allocation2 + $0xb0] sm:$0xff] %v357
      %364 = vst [vmem:[#allocation2 + $0xb8] sm:$0xff] %v358
      %365 = vrot.lane.b32.xlu0 %v227, 90
      %v366 = vpop.permute.xlu0 %365
      %367 = vrot.lane.b32.xlu0 %v228, 90
      %v368 = vpop.permute.xlu0 %367
      %369 = vrot.lane.b32.xlu0 %v229, 90
      %v370 = vpop.permute.xlu0 %369
      %371 = vrot.lane.b32.xlu0 %v238, 90
      %v372 = vpop.permute.xlu0 %371
      %vm373 = vcmask 736256
      %v374 = vsel %vm373, %v366, %v368
      %v375 = vsel %vm373, %v368, %v370
      %v376 = vsel %vm373, %v370, %v372
      %380 = vst [vmem:[#allocation2 + $0xc0] sm:$0xff] %v374
      %381 = vst [vmem:[#allocation2 + $0xc8] sm:$0xff] %v375
      %382 = vst [vmem:[#allocation2 + $0xd0] sm:$0xff] %v376
      %383 = vst [vmem:[#allocation2 + $0xd8] sm:$0xff] 1065369472
      %384 = vst [vmem:[#allocation2 + $0xe0] sm:$0xff] 1065369472
      %385 = vst [vmem:[#allocation2 + $0xe8] sm:$0xff] 1065369472
      %v386 = vld [vmem:[%s1] sm:$0xff]
      %v387 = vld [vmem:[%s1 + $0x8] sm:$0xff]
      %v388 = vld [vmem:[#allocation2] sm:$0xff]
      %v389 = vld [vmem:[#allocation2 + $0x8] sm:$0xff]
      %v390 = vld [vmem:[#allocation2 + $0x10] sm:$0xff]
      %v391 = vld [vmem:[#allocation2 + $0x18] sm:$0xff]
      %v392 = vld [vmem:[#allocation2 + $0x20] sm:$0xff]
      %v393 = vld [vmem:[#allocation2 + $0x28] sm:$0xff]
      %v394 = vld [vmem:[#allocation2 + $0x30] sm:$0xff]
      %v395 = vld [vmem:[#allocation2 + $0x38] sm:$0xff]
      %v396 = vld [vmem:[#allocation2 + $0x40] sm:$0xff]
      %v397 = vld [vmem:[#allocation2 + $0x48] sm:$0xff]
      %v398 = vld [vmem:[#allocation2 + $0x50] sm:$0xff]
      %v399 = vld [vmem:[#allocation2 + $0x58] sm:$0xff]
      %v400 = vld [vmem:[#allocation2 + $0x60] sm:$0xff]
      %v401 = vld [vmem:[#allocation2 + $0x68] sm:$0xff]
      %v402 = vld [vmem:[#allocation2 + $0x70] sm:$0xff]
      %v403 = vld [vmem:[#allocation2 + $0x78] sm:$0xff]
      %v404 = vld [vmem:[#allocation2 + $0x80] sm:$0xff]
      %v405 = vld [vmem:[#allocation2 + $0x88] sm:$0xff]
      %v406 = vld [vmem:[#allocation2 + $0x90] sm:$0xff]
      %v407 = vld [vmem:[#allocation2 + $0x98] sm:$0xff]
      %v408 = vld [vmem:[#allocation2 + $0xa0] sm:$0xff]
      %v409 = vld [vmem:[#allocation2 + $0xa8] sm:$0xff]
      %v410 = vld [vmem:[#allocation2 + $0xb0] sm:$0xff]
      %v411 = vld [vmem:[#allocation2 + $0xb8] sm:$0xff]
      %v412 = vld [vmem:[#allocation2 + $0xc0] sm:$0xff]
      %v413 = vld [vmem:[#allocation2 + $0xc8] sm:$0xff]
      %v414 = vld [vmem:[#allocation2 + $0xd0] sm:$0xff]
      %v415 = vld [vmem:[#allocation2 + $0xd8] sm:$0xff]
      %v416 = vld [vmem:[#allocation2 + $0xe0] sm:$0xff]
      %v417 = vld [vmem:[#allocation2 + $0xe8] sm:$0xff]
      %v420 = vunpack.c.l.b16 %v386
      %v421 = vunpack.c.h.b16 %v386
      %v422 = vunpack.c.l.b16 %v387
      %v423 = vunpack.c.h.b16 %v387
      %v424 = vpack.c.b16 %v422, %v420
      %v425 = vpack.c.b16 %v423, %v421
      %vm427 = vcmask 261120
      %v429 = vsel %vm427, %v425, 0
      %431 = vmatprep.subr.bf16.mxu0 %v389
      %432 = vmatpush1.bf16.msra.mxu0 %v388
      %433 = vmatprep.subr.bf16.mxu0 %v392
      %434 = vmatpush1.bf16.msra.mxu0 %v391
      %435 = vmatprep.subr.bf16.mxu0 %v395
      %436 = vmatpush1.bf16.msra.mxu0 %v394
      %437 = vmatprep.subr.bf16.mxu0 %v398
      %438 = vmatpush1.bf16.msra.mxu0 %v397
      %439 = vmatprep.subr.bf16.mxu0 %v401
      %440 = vmatpush1.bf16.msra.mxu0 %v400
      %441 = vmatprep.subr.bf16.mxu0 %v404
      %442 = vmatpush1.bf16.msra.mxu0 %v403
      %443 = vmatprep.subr.bf16.mxu0 %v407
      %444 = vmatpush1.bf16.msra.mxu0 %v406
      %445 = vmatprep.subr.bf16.mxu0 %v410
      %446 = vmatpush1.bf16.msra.mxu0 %v409
      %447 = vmatprep.subr.bf16.mxu0 %v413
      %448 = vmatpush1.bf16.msra.mxu0 %v412
      %449 = vmatprep.subr.bf16.mxu0 %v416
      %450 = vmatpush1.bf16.msra.mxu0 %v415
      %451 = vmatprep.subr.bf16.mxu0 0
      %452 = vmatpush1.bf16.msra.mxu0 0
      %453 = vmatprep.subr.bf16.mxu0 0
      %454 = vmatpush1.bf16.msra.mxu0 0
      %455 = vmatprep.subr.bf16.mxu0 0
      %456 = vmatpush1.bf16.msra.mxu0 0
      %457 = vmatprep.subr.bf16.mxu0 0
      %458 = vmatpush1.bf16.msra.mxu0 0
      %459 = vmatprep.subr.bf16.mxu0 0
      %460 = vmatpush1.bf16.msra.mxu0 0
      %461 = vmatprep.subr.bf16.mxu0 0
      %462 = vmatpush1.bf16.msra.mxu0 0
      %463 = vmatprep.mubr.bf16.mxu0 %v429
      %464 = vmatmul.mubr.bf16.gmra.mrb[0].mxu0 %v424
      %v465 = vpop.f32.mrb[0].mxu0
      %v466 = vadd.f32 0.0, %v465
      %v467 = vpop.f32.mrb[0].mxu0
      %v468 = vadd.f32 0.0, %v467
      %v469 = vpop.f32.mrb[0].mxu0
      %v470 = vadd.f32 0.0, %v469
      %v471 = vpop.f32.mrb[0].mxu0
      %v472 = vadd.f32 0.0, %v471
      %473 = vdwg.mxu0
      %474 = vmatprep.subr.bf16.mxu0 0
      %475 = vmatpush1.bf16.msra.mxu0 %v390
      %476 = vmatprep.subr.bf16.mxu0 0
      %477 = vmatpush1.bf16.msra.mxu0 %v393
      %478 = vmatprep.subr.bf16.mxu0 0
      %479 = vmatpush1.bf16.msra.mxu0 %v396
      %480 = vmatprep.subr.bf16.mxu0 0
      %481 = vmatpush1.bf16.msra.mxu0 %v399
      %482 = vmatprep.subr.bf16.mxu0 0
      %483 = vmatpush1.bf16.msra.mxu0 %v402
      %484 = vmatprep.subr.bf16.mxu0 0
      %485 = vmatpush1.bf16.msra.mxu0 %v405
      %486 = vmatprep.subr.bf16.mxu0 0
      %487 = vmatpush1.bf16.msra.mxu0 %v408
      %488 = vmatprep.subr.bf16.mxu0 0
      %489 = vmatpush1.bf16.msra.mxu0 %v411
      %490 = vmatprep.subr.bf16.mxu0 0
      %491 = vmatpush1.bf16.msra.mxu0 %v414
      %492 = vmatprep.subr.bf16.mxu0 0
      %493 = vmatpush1.bf16.msra.mxu0 %v417
      %494 = vmatprep.subr.bf16.mxu0 0
      %495 = vmatpush1.bf16.msra.mxu0 0
      %496 = vmatprep.subr.bf16.mxu0 0
      %497 = vmatpush1.bf16.msra.mxu0 0
      %498 = vmatprep.subr.bf16.mxu0 0
      %499 = vmatpush1.bf16.msra.mxu0 0
      %500 = vmatprep.subr.bf16.mxu0 0
      %501 = vmatpush1.bf16.msra.mxu0 0
      %502 = vmatprep.subr.bf16.mxu0 0
      %503 = vmatpush1.bf16.msra.mxu0 0
      %504 = vmatprep.subr.bf16.mxu0 0
      %505 = vmatpush1.bf16.msra.mxu0 0
      %506 = vmatprep.mubr.bf16.mxu0 %v429
      %507 = vmatmul.mubr.bf16.gmra.mrb[0].mxu0 %v424
      %v508 = vpop.f32.mrb[0].mxu0
      %v509 = vadd.f32 0.0, %v508
      %v510 = vpop.f32.mrb[0].mxu0
      %v511 = vpop.f32.mrb[0].mxu0
      %v512 = vadd.f32 0.0, %v511
      %v513 = vpop.f32.mrb[0].mxu0
      %514 = vdwg.mxu0
      %v518 = vcombine.low %v466, %v468
      %v519 = vcombine.high %v466, %v468
      %v520 = vcombine.high %v509, %v509
      %v524 = vcombine.high %v518, %v518
      %v525 = vcombine.high %v519, %v519
      %vm528 = vcmask 1043456
      %v529 = vsel %vm528, %v518, -inf
      %v530 = vrot.slane %v529, 4
      %v531 = vmax.f32 %v529, %v530
      %v532 = vrot.slane %v531, 2
      %v533 = vmax.f32 %v531, %v532
      %v534 = vrot.slane %v533, 1
      %v535 = vmax.f32 %v533, %v534
      %v536 = vsel %vm528, %v524, -inf
      %v537 = vrot.slane %v536, 4
      %v538 = vmax.f32 %v536, %v537
      %v539 = vrot.slane %v538, 2
      %v540 = vmax.f32 %v538, %v539
      %v541 = vrot.slane %v540, 1
      %v542 = vmax.f32 %v540, %v541
      %v543 = vsel %vm528, %v509, -inf
      %v544 = vrot.slane %v543, 4
      %v545 = vmax.f32 %v543, %v544
      %v546 = vrot.slane %v545, 2
      %v547 = vmax.f32 %v545, %v546
      %v548 = vrot.slane %v547, 1
      %v549 = vmax.f32 %v547, %v548
      %v550 = vsel %vm528, %v519, -inf
      %v551 = vrot.slane %v550, 4
      %v552 = vmax.f32 %v550, %v551
      %v553 = vrot.slane %v552, 2
      %v554 = vmax.f32 %v552, %v553
      %v555 = vrot.slane %v554, 1
      %v556 = vmax.f32 %v554, %v555
      %v557 = vsel %vm528, %v525, -inf
      %v558 = vrot.slane %v557, 4
      %v559 = vmax.f32 %v557, %v558
      %v560 = vrot.slane %v559, 2
      %v561 = vmax.f32 %v559, %v560
      %v562 = vrot.slane %v561, 1
      %v563 = vmax.f32 %v561, %v562
      %v564 = vsel %vm528, %v520, -inf
      %v565 = vrot.slane %v564, 4
      %v566 = vmax.f32 %v564, %v565
      %v567 = vrot.slane %v566, 2
      %v568 = vmax.f32 %v566, %v567
      %v569 = vrot.slane %v568, 1
      %v570 = vmax.f32 %v568, %v569
      %v575 = vcombine.low %v535, %v542
      %v576 = vcombine.low %v556, %v563
      %v579 = vsub.f32 %v518, %v575
      %v580 = vsub.f32 %v509, %v549
      %v581 = vsub.f32 %v519, %v576
      %v582 = vsub.f32 %v520, %v570
      %v583 = vmul.f32 %v579, 1.442695
      %v584 = vpow.pop %v583
      %v585 = vmul.f32 %v580, 1.442695
      %v586 = vpow.pop %v585
      %v587 = vmul.f32 %v581, 1.442695
      %v588 = vpow.pop %v587
      %v589 = vmul.f32 %v582, 1.442695
      %v590 = vpow.pop %v589
      %v593 = vcombine.high %v584, %v584
      %v594 = vcombine.high %v588, %v588
      %v597 = vsel %vm528, %v584, 0.0
      %v598 = vrot.slane %v597, 4
      %v599 = vadd.f32 %v597, %v598
      %v600 = vrot.slane %v599, 2
      %v601 = vadd.f32 %v599, %v600
      %v602 = vrot.slane %v601, 1
      %v603 = vadd.f32 %v601, %v602
      %v604 = vsel %vm528, %v593, 0.0
      %v605 = vrot.slane %v604, 4
      %v606 = vadd.f32 %v604, %v605
      %v607 = vrot.slane %v606, 2
      %v608 = vadd.f32 %v606, %v607
      %v609 = vrot.slane %v608, 1
      %v610 = vadd.f32 %v608, %v609
      %v611 = vsel %vm528, %v586, 0.0
      %v612 = vrot.slane %v611, 4
      %v613 = vadd.f32 %v611, %v612
      %v614 = vrot.slane %v613, 2
      %v615 = vadd.f32 %v613, %v614
      %v616 = vrot.slane %v615, 1
      %v617 = vadd.f32 %v615, %v616
      %v618 = vsel %vm528, %v588, 0.0
      %v619 = vrot.slane %v618, 4
      %v620 = vadd.f32 %v618, %v619
      %v621 = vrot.slane %v620, 2
      %v622 = vadd.f32 %v620, %v621
      %v623 = vrot.slane %v622, 1
      %v624 = vadd.f32 %v622, %v623
      %v625 = vsel %vm528, %v594, 0.0
      %v626 = vrot.slane %v625, 4
      %v627 = vadd.f32 %v625, %v626
      %v628 = vrot.slane %v627, 2
      %v629 = vadd.f32 %v627, %v628
      %v630 = vrot.slane %v629, 1
      %v631 = vadd.f32 %v629, %v630
      %v632 = vsel %vm528, %v590, 0.0
      %v633 = vrot.slane %v632, 4
      %v634 = vadd.f32 %v632, %v633
      %v635 = vrot.slane %v634, 2
      %v636 = vadd.f32 %v634, %v635
      %v637 = vrot.slane %v636, 1
      %v638 = vadd.f32 %v636, %v637
      %v643 = vcombine.low %v603, %v610
      %v644 = vcombine.low %v624, %v631
      %v647 = vrcp.pop %v643
      %v648 = vmul.f32 %v584, %v647
      %v649 = vrcp.pop %v617
      %v650 = vmul.f32 %v586, %v649
      %v651 = vrcp.pop %v644
      %v652 = vmul.f32 %v588, %v651
      %v653 = vrcp.pop %v638
      %v654 = vmul.f32 %v590, %v653
      %v659 = vcombine.low %v648, %v652
      %v660 = vcombine.high %v648, %v652
      %v661 = vcombine.low %v650, %v654
      %665 = vst [vmem:[%s205] sm:$0xff] %v659
      %666 = vst [vmem:[%s205 + $0x8] sm:$0xff] %v660
      %667 = vst [vmem:[%s205 + $0x10] sm:$0xff] %v661
      %v671 = vcombine.low %v470, %v472
      %v672 = vcombine.high %v470, %v472
      %v673 = vcombine.high %v512, %v512
      %v677 = vld [vmem:[%s2] sm:$0xff]
      %v678 = vld [vmem:[%s2 + $0x8] sm:$0xff]
      %v679 = vld [vmem:[%s2 + $0x10] sm:$0xff]
      %v683 = vcombine.low %v677, %v678
      %v684 = vcombine.high %v677, %v678
      %v685 = vcombine.high %v679, %v679
      %v689 = vrot.slane %v683, 6
      %v690 = vrot.slane %v679, 6
      %v691 = vrot.slane %v684, 6
      %v692 = vrot.slane %v685, 6
      %v697 = vsub.f32 %v683, %v689
      %v698 = vsub.f32 %v679, %v690
      %v699 = vsub.f32 %v684, %v691
      %v700 = vsub.f32 %v685, %v692
      %v701 = vmul.f32 %v697, 0.5
      %v702 = vmul.f32 %v698, 0.5
      %v703 = vmul.f32 %v699, 0.5
      %v704 = vmul.f32 %v700, 0.5
      %v709 = vrot.slane %v701, 6
      %v710 = vrot.slane %v709, 4
      %v711 = vrot.slane %v702, 6
      %v712 = vrot.slane %v711, 4
      %v713 = vrot.slane %v703, 6
      %v714 = vrot.slane %v713, 4
      %v715 = vrot.slane %v704, 6
      %v716 = vrot.slane %v715, 4
      %v721 = vadd.f32 %v683, %v710
      %v722 = vadd.f32 %v679, %v712
      %v723 = vadd.f32 %v684, %v714
      %v724 = vadd.f32 %v685, %v716
      %v725 = vmul.f32 %v671, 0.1
      %v726 = vmul.f32 %v512, 0.1
      %v727 = vmul.f32 %v672, 0.1
      %v728 = vmul.f32 %v673, 0.1
      %v729 = vmul.f32 %v671, 0.2
      %v730 = vmul.f32 %v512, 0.2
      %v731 = vmul.f32 %v672, 0.2
      %v732 = vmul.f32 %v673, 0.2
      %v733 = vmin.f32 %v729, 4.1351666
      %v734 = vmin.f32 %v730, 4.1351666
      %v735 = vmin.f32 %v731, 4.1351666
      %v736 = vmin.f32 %v732, 4.1351666
      %v737 = vmul.f32 %v733, 1.442695
      %v738 = vpow.pop %v737
      %v739 = vmul.f32 %v734, 1.442695
      %v740 = vpow.pop %v739
      %v741 = vmul.f32 %v735, 1.442695
      %v742 = vpow.pop %v741
      %v743 = vmul.f32 %v736, 1.442695
      %v744 = vpow.pop %v743
      %v749 = vlaneseq
      %v750 = vshrl.u32 %v749, 7
      %v751 = vsub.s32 2, %v750
      %v752 = vrot.slane %v697, %v751
      %v753 = vlaneseq
      %v754 = vshrl.u32 %v753, 7
      %v755 = vsub.s32 6, %v754
      %v756 = vrot.slane %v697, %v755
      %v757 = vlaneseq
      %v758 = vshrl.u32 %v757, 7
      %v759 = vsub.s32 2, %v758
      %v760 = vrot.slane %v698, %v759
      %v761 = vlaneseq
      %v762 = vshrl.u32 %v761, 7
      %v763 = vsub.s32 2, %v762
      %v764 = vrot.slane %v699, %v763
      %v765 = vlaneseq
      %v766 = vshrl.u32 %v765, 7
      %v767 = vsub.s32 6, %v766
      %v768 = vrot.slane %v699, %v767
      %v769 = vlaneseq
      %v770 = vshrl.u32 %v769, 7
      %v771 = vsub.s32 2, %v770
      %v772 = vrot.slane %v700, %v771
      %v779 = vlaneseq
      %v780 = vshrl.u32 %v779, 7
      %v781 = vsub.s32 3, %v780
      %v782 = vrot.slane %v697, %v781
      %v783 = vlaneseq
      %v784 = vshrl.u32 %v783, 7
      %v785 = vsub.s32 7, %v784
      %v786 = vrot.slane %v697, %v785
      %v787 = vlaneseq
      %v788 = vshrl.u32 %v787, 7
      %v789 = vsub.s32 3, %v788
      %v790 = vrot.slane %v698, %v789
      %v791 = vlaneseq
      %v792 = vshrl.u32 %v791, 7
      %v793 = vsub.s32 3, %v792
      %v794 = vrot.slane %v699, %v793
      %v795 = vlaneseq
      %v796 = vshrl.u32 %v795, 7
      %v797 = vsub.s32 7, %v796
      %v798 = vrot.slane %v699, %v797
      %v799 = vlaneseq
      %v800 = vshrl.u32 %v799, 7
      %v801 = vsub.s32 3, %v800
      %v802 = vrot.slane %v700, %v801
      %vm809 = vcmask 1040384
      %v810 = vsel %vm809, %v752, %v782
      %v811 = vsel %vm809, %v756, %v786
      %v812 = vsel %vm809, %v760, %v790
      %v813 = vsel %vm809, %v764, %v794
      %v814 = vsel %vm809, %v768, %v798
      %v815 = vsel %vm809, %v772, %v802
      %v822 = vcombine.low %v810, %v811
      %v823 = vcombine.low %v813, %v814
      %v824 = vrot.slane %v822, 6
      %v825 = vrot.slane %v812, 6
      %v826 = vrot.slane %v823, 6
      %v827 = vrot.slane %v815, 6
      %v832 = vmul.f32 %v738, %v824
      %v833 = vmul.f32 %v740, %v825
      %v834 = vmul.f32 %v742, %v826
      %v835 = vmul.f32 %v744, %v827
      %v836 = vrot.slane %v697, 6
      %v837 = vrot.slane %v836, 4
      %v838 = vrot.slane %v698, 6
      %v839 = vrot.slane %v838, 4
      %v840 = vrot.slane %v699, 6
      %v841 = vrot.slane %v840, 4
      %v842 = vrot.slane %v700, 6
      %v843 = vrot.slane %v842, 4
      %v848 = vmul.f32 %v725, %v837
      %v849 = vmul.f32 %v726, %v839
      %v850 = vmul.f32 %v727, %v841
      %v851 = vmul.f32 %v728, %v843
      %v852 = vadd.f32 %v848, %v721
      %v853 = vadd.f32 %v849, %v722
      %v854 = vadd.f32 %v850, %v723
      %v855 = vadd.f32 %v851, %v724
      %v856 = vmul.f32 %v832, 0.5
      %v857 = vmul.f32 %v833, 0.5
      %v858 = vmul.f32 %v834, 0.5
      %v859 = vmul.f32 %v835, 0.5
      %v864 = vrot.slane %v856, 6
      %v865 = vrot.slane %v864, 4
      %v866 = vrot.slane %v857, 6
      %v867 = vrot.slane %v866, 4
      %v868 = vrot.slane %v858, 6
      %v869 = vrot.slane %v868, 4
      %v870 = vrot.slane %v859, 6
      %v871 = vrot.slane %v870, 4
      %v876 = vsub.f32 %v852, %v865
      %v877 = vsub.f32 %v853, %v867
      %v878 = vsub.f32 %v854, %v869
      %v879 = vsub.f32 %v855, %v871
      %v880 = vmax.f32 %v876, 0.0
      %v881 = vmax.f32 %v877, 0.0
      %v882 = vmax.f32 %v878, 0.0
      %v883 = vmax.f32 %v879, 0.0
      %v884 = vmin.f32 %v880, 32.0
      %v885 = vmin.f32 %v881, 32.0
      %v886 = vmin.f32 %v882, 32.0
      %v887 = vmin.f32 %v883, 32.0
      %v888 = vadd.f32 %v852, %v865
      %v889 = vadd.f32 %v853, %v867
      %v890 = vadd.f32 %v854, %v869
      %v891 = vadd.f32 %v855, %v871
      %v892 = vmax.f32 %v888, 0.0
      %v893 = vmax.f32 %v889, 0.0
      %v894 = vmax.f32 %v890, 0.0
      %v895 = vmax.f32 %v891, 0.0
      %v896 = vmin.f32 %v892, 32.0
      %v897 = vmin.f32 %v893, 32.0
      %v898 = vmin.f32 %v894, 32.0
      %v899 = vmin.f32 %v895, 32.0
      %v904 = vlaneseq
      %v905 = vshrl.u32 %v904, 7
      %v906 = vsub.s32 0, %v905
      %v907 = vrot.slane %v884, %v906
      %v908 = vlaneseq
      %v909 = vshrl.u32 %v908, 7
      %v910 = vsub.s32 4, %v909
      %v911 = vrot.slane %v884, %v910
      %v912 = vlaneseq
      %v913 = vshrl.u32 %v912, 7
      %v914 = vsub.s32 0, %v913
      %v915 = vrot.slane %v885, %v914
      %v916 = vlaneseq
      %v917 = vshrl.u32 %v916, 7
      %v918 = vsub.s32 0, %v917
      %v919 = vrot.slane %v886, %v918
      %v920 = vlaneseq
      %v921 = vshrl.u32 %v920, 7
      %v922 = vsub.s32 4, %v921
      %v923 = vrot.slane %v886, %v922
      %v924 = vlaneseq
      %v925 = vshrl.u32 %v924, 7
      %v926 = vsub.s32 0, %v925
      %v927 = vrot.slane %v887, %v926
      %v934 = vlaneseq
      %v935 = vshrl.u32 %v934, 7
      %v936 = vsub.s32 1, %v935
      %v937 = vrot.slane %v884, %v936
      %v938 = vlaneseq
      %v939 = vshrl.u32 %v938, 7
      %v940 = vsub.s32 5, %v939
      %v941 = vrot.slane %v884, %v940
      %v942 = vlaneseq
      %v943 = vshrl.u32 %v942, 7
      %v944 = vsub.s32 1, %v943
      %v945 = vrot.slane %v885, %v944
      %v946 = vlaneseq
      %v947 = vshrl.u32 %v946, 7
      %v948 = vsub.s32 1, %v947
      %v949 = vrot.slane %v886, %v948
      %v950 = vlaneseq
      %v951 = vshrl.u32 %v950, 7
      %v952 = vsub.s32 5, %v951
      %v953 = vrot.slane %v886, %v952
      %v954 = vlaneseq
      %v955 = vshrl.u32 %v954, 7
      %v956 = vsub.s32 1, %v955
      %v957 = vrot.slane %v887, %v956
      %v968 = vlaneseq
      %v969 = vshrl.u32 %v968, 7
      %v970 = vsub.s32 0, %v969
      %v971 = vrot.slane %v896, %v970
      %v972 = vlaneseq
      %v973 = vshrl.u32 %v972, 7
      %v974 = vsub.s32 4, %v973
      %v975 = vrot.slane %v896, %v974
      %v976 = vlaneseq
      %v977 = vshrl.u32 %v976, 7
      %v978 = vsub.s32 0, %v977
      %v979 = vrot.slane %v897, %v978
      %v980 = vlaneseq
      %v981 = vshrl.u32 %v980, 7
      %v982 = vsub.s32 0, %v981
      %v983 = vrot.slane %v898, %v982
      %v984 = vlaneseq
      %v985 = vshrl.u32 %v984, 7
      %v986 = vsub.s32 4, %v985
      %v987 = vrot.slane %v898, %v986
      %v988 = vlaneseq
      %v989 = vshrl.u32 %v988, 7
      %v990 = vsub.s32 0, %v989
      %v991 = vrot.slane %v899, %v990
      %v998 = vlaneseq
      %v999 = vshrl.u32 %v998, 7
      %v1000 = vsub.s32 1, %v999
      %v1001 = vrot.slane %v896, %v1000
      %v1002 = vlaneseq
      %v1003 = vshrl.u32 %v1002, 7
      %v1004 = vsub.s32 5, %v1003
      %v1005 = vrot.slane %v896, %v1004
      %v1006 = vlaneseq
      %v1007 = vshrl.u32 %v1006, 7
      %v1008 = vsub.s32 1, %v1007
      %v1009 = vrot.slane %v897, %v1008
      %v1010 = vlaneseq
      %v1011 = vshrl.u32 %v1010, 7
      %v1012 = vsub.s32 1, %v1011
      %v1013 = vrot.slane %v898, %v1012
      %v1014 = vlaneseq
      %v1015 = vshrl.u32 %v1014, 7
      %v1016 = vsub.s32 5, %v1015
      %v1017 = vrot.slane %v898, %v1016
      %v1018 = vlaneseq
      %v1019 = vshrl.u32 %v1018, 7
      %v1020 = vsub.s32 1, %v1019
      %v1021 = vrot.slane %v899, %v1020
      %v1028 = vsel %vm809, %v907, %v937
      %v1029 = vsel %vm809, %v911, %v941
      %v1030 = vsel %vm809, %v915, %v945
      %v1031 = vsel %vm809, %v919, %v949
      %v1032 = vsel %vm809, %v923, %v953
      %v1033 = vsel %vm809, %v927, %v957
      %vm1034 = vcmask 1041408
      %v1035 = vsel %vm1034, %v1028, %v971
      %v1036 = vsel %vm1034, %v1029, %v975
      %v1037 = vsel %vm1034, %v1030, %v979
      %v1038 = vsel %vm1034, %v1031, %v983
      %v1039 = vsel %vm1034, %v1032, %v987
      %v1040 = vsel %vm1034, %v1033, %v991
      %vm1041 = vcmask 1042432
      %v1042 = vsel %vm1041, %v1035, %v1001
      %v1043 = vsel %vm1041, %v1036, %v1005
      %v1044 = vsel %vm1041, %v1037, %v1009
      %v1045 = vsel %vm1041, %v1038, %v1013
      %v1046 = vsel %vm1041, %v1039, %v1017
      %v1047 = vsel %vm1041, %v1040, %v1021
      %v1054 = vcombine.low %v1042, %v1043
      %v1055 = vcombine.low %v1045, %v1046
      %v1056 = vcombine.low %v1054, %v1055
      %v1057 = vcombine.high %v1054, %v1055
      %v1058 = vcombine.low %v1044, %v1047
      %1062 = vst [vmem:[%s210] sm:$0xff] %v1056
      %1063 = vst [vmem:[%s210 + $0x8] sm:$0xff] %v1057
      %1064 = vst [vmem:[%s210 + $0x10] sm:$0xff] %v1058
      %p1065 = scmp.lt.s32.totalorder %s16, 1
      %s1066 = scalar_select %p1065, %s16, 1
      %s1067 = smul.addr %s1066, 3
      %s1068 = smul.addr %s1067, 8
      %s1069 = scalar_lea.vmem %s3, %s1068
      %p1070 = scmp.lt.s32.totalorder %s16, 1
      %s1071 = scalar_select %p1070, %s16, 1
      %s1072 = smul.addr %s1071, 3
      %s1073 = smul.addr %s1072, 8
      %s1074 = scalar_lea.vmem %s4, %s1073
      // Predicated region
      $region33: #{ssd_forward.1} parent=31 // pred_check
        %p1075 = pneg %p102
      $region34: #{ssd_forward.1} parent=31 // pred_check_branch
        %1077 = sbr.rel (%p1075) target = $region36
      $region35: #{ssd_forward.1} parent=31 // pred_region
        _
      $region36: #{ssd_forward.1} parent=31 // pred_fallthru
        _
      // Predicated region
      $region37: #{ssd_forward.1} parent=31 // pred_check
        %p1078 = pneg %p128
      $region38: #{ssd_forward.1} parent=31 // pred_check_branch
        %1080 = sbr.rel (%p1078) target = $region40
      $region39: #{ssd_forward.1} parent=31 // pred_region
        _
      $region40: #{ssd_forward.1} parent=31 // pred_fallthru
        _
    $region32: #{ssd_forward.1} parent=5 // pred_fallthru
      _
    %p1081 = scmp.le.s32.totalorder 2, %s11
    // Predicated region
    $region41: #{ssd_forward.1} parent=5 // pred_check
      %p1082 = pneg %p1081
    $region42: #{ssd_forward.1} parent=5 // pred_check_branch
      %1084 = sbr.rel (%p1082) target = $region44
    $region43: #{ssd_forward.1} parent=5 // pred_region
      %s1085 = ssub.s32 %s11, 2
      // Predicated region
      $region45: #{ssd_forward.1} parent=43 // pred_check
        %p1086 = pneg %p108
      $region46: #{ssd_forward.1} parent=43 // pred_check_branch
        %1088 = sbr.rel (%p1086) target = $region48
      $region47: #{ssd_forward.1} parent=43 // pred_region
        %p1089 = scmp.lt.s32.totalorder %s17, 1
        %s1090 = scalar_select %p1089, %s17, 1
        %s1091 = smul.addr %s1090, 3
        %s1092 = smul.addr %s1091, 8
        %s1093 = scalar_lea.vmem %s3, %s1092
      $region48: #{ssd_forward.1} parent=43 // pred_fallthru
        _
      // Predicated region
      $region49: #{ssd_forward.1} parent=43 // pred_check
        %p1094 = pneg %p134
      $region50: #{ssd_forward.1} parent=43 // pred_check_branch
        %1096 = sbr.rel (%p1094) target = $region52
      $region51: #{ssd_forward.1} parent=43 // pred_region
        %p1097 = scmp.lt.s32.totalorder %s17, 1
        %s1098 = scalar_select %p1097, %s17, 1
        %s1099 = smul.addr %s1098, 3
        %s1100 = smul.addr %s1099, 8
        %s1101 = scalar_lea.vmem %s4, %s1100
      $region52: #{ssd_forward.1} parent=43 // pred_fallthru
        _
    $region44: #{ssd_forward.1} parent=5 // pred_fallthru
      _
  $region6: #{ssd_forward.1} parent=0 // loop_footer
    %s15 = sadd.s32 1, %s11
  $region7: #{ssd_forward.1} parent=0 // loop_footer_branch
    %10 = sbr.rel target = $region3
  $region8: #{ssd_forward.1} parent=0 // loop_exit
    _

</llo_original>
